<compile_context>
chip_gen: v7x
topology: tpu7x:2x2x1
jax: 0.10.0
libtpu: 0.0.40
codegen_flags: <defaults>
</compile_context>

<pallas_src>
import functools

import jax
import jax.numpy as jnp
from jax.experimental import pallas as pl
from jax.experimental.pallas import tpu as pltpu

_MIB = 1024 * 1024


def _round_up(x: int, m: int) -> int:
    return (x + m - 1) // m * m


def _tpu_plan():
    """Per-generation tiling / VMEM plan.

    Returns dict(vmem_cap, align, tm, two_cores).  Conservative defaults when
    the chip generation cannot be identified.
    """
    kind = ""
    try:
        kind = jax.devices()[0].device_kind.lower()
    except Exception:
        pass
    if "v7" in kind or "7x" in kind:
        # 64 MiB VMEM per TensorCore, 2 TCs/chip, 2x256x256 MXU.
        return dict(vmem_cap=52 * _MIB, align=256, tm=512, two_cores=True)
    if "v6" in kind:
        # 128 MiB VMEM, 2x256x256 MXU; ~918 TF/s / 1.4 TB/s => want tm >= ~650.
        return dict(vmem_cap=100 * _MIB, align=256, tm=768, two_cores=False)
    if "v5p" in kind:
        return dict(vmem_cap=100 * _MIB, align=128, tm=512, two_cores=False)
    if "v5" in kind or "v4" in kind or "v3" in kind or "v2" in kind:
        # v5e: 128 MiB VMEM, 4x128x128 MXU; crossover ~tm >= 240.
        return dict(vmem_cap=100 * _MIB, align=128, tm=256, two_cores=False)
    # Unknown chip: assume the most restrictive (v7x-like) budget.
    return dict(vmem_cap=48 * _MIB, align=256, tm=512, two_cores=True)


# ----------------------------------------------------------------------------
# Kernels
# ----------------------------------------------------------------------------
def _ffn_resident_kernel(x_ref, w1_ref, b1_ref, w2_ref, b2_ref, o_ref, *,
                         n_chunks, tk):
    """Weights fully VMEM-resident; 1-D grid over row tiles.

    d_ff is chunked with static in-kernel slices to bound the f32 intermediate.
    The accumulator is initialized with the broadcast b2 so there is no
    zero-init and no epilogue bias add.
    """
    x = x_ref[...]
    tm = x.shape[0]
    acc = jnp.broadcast_to(b2_ref[...], (tm, b2_ref.shape[1])).astype(jnp.float32)
    for c in range(n_chunks):          # static unroll; slices are 128-aligned
        lo = c * tk
        h = jnp.dot(x, w1_ref[:, lo:lo + tk], preferred_element_type=jnp.float32)
        h = jnp.maximum(h + b1_ref[:, lo:lo + tk], 0.0)   # bias + ReLU in f32
        acc = acc + jnp.dot(h.astype(w2_ref.dtype), w2_ref[lo:lo + tk, :],
                            preferred_element_type=jnp.float32)
    o_ref[...] = acc.astype(o_ref.dtype)


def _ffn_stream_kernel(x_ref, w1_ref, b1_ref, w2_ref, b2_ref, o_ref, acc_ref):
    """Fallback: weights streamed in d_ff chunks over grid axis 1 ("arbitrary")."""
    k = pl.program_id(1)
    nk = pl.num_programs(1)

    h = jnp.dot(x_ref[...], w1_ref[...], preferred_element_type=jnp.float32)
    h = jnp.maximum(h + b1_ref[...], 0.0)
    contrib = jnp.dot(h.astype(w2_ref.dtype), w2_ref[...],
                      preferred_element_type=jnp.float32)

    @pl.when(k == 0)
    def _():
        # Direct write (no zero-init + '+='); fold in b2 here so the epilogue
        # is just a cast + store.
        acc_ref[...] = contrib + b2_ref[...]

    @pl.when(k > 0)
    def _():
        acc_ref[...] += contrib

    @pl.when(k == nk - 1)
    def _():
        o_ref[...] = acc_ref[...].astype(o_ref.dtype)


# ----------------------------------------------------------------------------
# Parameter preparation (hoisted: run once per parameter set)
# ----------------------------------------------------------------------------
def prepare_ffn_params(w1, b1, w2, b2, *, compute_dtype=jnp.bfloat16,
                       tm=None, tk=None, force_stream_weights=False):
    """
    w1 : [d_model, d_ff]   (transposed vs. torch nn.Linear weight)
    b1 : [d_ff]
    w2 : [d_ff, d_model]
    b2 : [d_model]
    Casts/pads the weights once and fixes the tiling plan (resident vs. streamed).
    """
    d_model, d_ff = w1.shape
    assert w2.shape == (d_ff, d_model)
    assert b1.shape == (d_ff,) and b2.shape == (d_model,)

    plan = _tpu_plan()
    align = plan["align"]
    vmem_cap = plan["vmem_cap"]
    cbytes = jnp.dtype(compute_dtype).itemsize

    tm_target = max(8, _round_up(int(tm) if tm is not None else plan["tm"], 8))
    d_model_p = _round_up(max(d_model, align), align)     # lane-dense, MXU-aligned N
    d_ff_base = _round_up(max(d_ff, align), align)

    tk_target = int(tk) if tk is not None else min(d_ff_base, 4 * align)
    tk_target = min(max(128, _round_up(tk_target, 128)), d_ff_base)

    def d_ff_pad(tk_):
        return _round_up(d_ff_base, tk_)

    # Conservative: assume Pallas may double-buffer even constant-index blocks.
    def resident_need(tm_, tk_):
        dfp = d_ff_pad(tk_)
        weights = 2 * 2 * d_model_p * dfp * cbytes           # W1 + W2
        biases = 2 * (8 * dfp + 8 * d_model_p) * 4           # f32, 8-sublane padded
        x_tiles = 2 * tm_ * d_model_p * cbytes
        o_tiles = 2 * tm_ * d_model_p * 4
        acc = tm_ * d_model_p * 4
        interm = tm_ * tk_ * (4 + cbytes)                    # h f32 + bf16 cast
        return weights + biases + x_tiles + o_tiles + acc + interm + 2 * _MIB

    def stream_need(tm_, tk_):
        w_tiles = 2 * 2 * d_model_p * tk_ * cbytes           # W1/W2 chunks, dbl-buf
        biases = 2 * (8 * tk_ + 8 * d_model_p) * 4
        x_tiles = 2 * tm_ * d_model_p * cbytes
        o_tiles = 2 * tm_ * d_model_p * 4
        acc = tm_ * d_model_p * 4
        interm = tm_ * tk_ * (4 + cbytes)
        return w_tiles + biases + x_tiles + o_tiles + acc + interm + 2 * _MIB

    tm_final, tk_final = tm_target, tk_target
    use_resident = not force_stream_weights
    if use_resident:
        while resident_need(tm_final, tk_final) > vmem_cap and tk_final > 128:
            tk_final = max(128, _round_up(tk_final // 2, 128))
        while resident_need(tm_final, tk_final) > vmem_cap and tm_final > 64:
            tm_final = max(64, _round_up(tm_final // 2, 8))
        use_resident = resident_need(tm_final, tk_final) <= vmem_cap
    if not use_resident:
        tm_final, tk_final = tm_target, tk_target
        while stream_need(tm_final, tk_final) > vmem_cap and tk_final > 128:
            tk_final = max(128, _round_up(tk_final // 2, 128))
        while stream_need(tm_final, tk_final) > vmem_cap and tm_final > 64:
            tm_final = max(64, _round_up(tm_final // 2, 8))

    d_ff_p = d_ff_pad(tk_final)

    w1p = jnp.pad(w1.astype(compute_dtype),
                  ((0, d_model_p - d_model), (0, d_ff_p - d_ff)))
    b1p = jnp.pad(b1.astype(jnp.float32), (0, d_ff_p - d_ff)).reshape(1, d_ff_p)
    w2p = jnp.pad(w2.astype(compute_dtype),
                  ((0, d_ff_p - d_ff), (0, d_model_p - d_model)))
    b2p = jnp.pad(b2.astype(jnp.float32),
                  (0, d_model_p - d_model)).reshape(1, d_model_p)

    return dict(d_model=d_model, d_ff=d_ff, d_model_p=d_model_p, d_ff_p=d_ff_p,
                tm=tm_final, tk=tk_final, use_resident=use_resident,
                compute_dtype=compute_dtype, plan=plan,
                w1p=w1p, b1p=b1p, w2p=w2p, b2p=b2p)


# ----------------------------------------------------------------------------
# Forward pass
# ----------------------------------------------------------------------------
def positionwise_ffn(x, w1=None, b1=None, w2=None, b2=None, *, prepared=None,
                     **prep_kwargs):
    """
    x : [batch, seq, d_model] -> [batch, seq, d_model] (x.dtype)
    Either pass raw (w1, b1, w2, b2) or a dict from prepare_ffn_params().
    """
    if prepared is None:
        prepared = prepare_ffn_params(w1, b1, w2, b2, **prep_kwargs)
    p = prepared

    batch, seq, d_model = x.shape
    assert d_model == p["d_model"]
    M = batch * seq
    out_dtype = x.dtype
    cdt = p["compute_dtype"]
    cbytes = jnp.dtype(cdt).itemsize
    obytes = jnp.dtype(out_dtype).itemsize
    d_model_p, d_ff_p, tk = p["d_model_p"], p["d_ff_p"], p["tk"]
    plan = p["plan"]

    # Row tile: generation-aware target, clamped to the padded row count; on
    # 2-TensorCore chips guarantee >= 2 row blocks so the "parallel" axis feeds
    # both cores.
    tm = max(8, min(p["tm"], _round_up(M, 8)))
    if plan["two_cores"] and M > 8 and _round_up(M, tm) // tm < 2:
        tm = min(tm, max(8, _round_up((M + 1) // 2, 8)))
    M_p = _round_up(M, tm)
    n_rows = M_p // tm

    x2d = x.reshape(M, d_model)
    if x2d.dtype != cdt or M_p != M or d_model_p != d_model:
        x2d = jnp.pad(x2d.astype(cdt), ((0, M_p - M), (0, d_model_p - d_model)))

    vmem_limit = int(plan["vmem_cap"])
    flops = 4 * M_p * d_model_p * d_ff_p   # two matmuls, 2*M*K*N each

    if p["use_resident"]:
        n_chunks = d_ff_p // tk
        kernel = functools.partial(_ffn_resident_kernel, n_chunks=n_chunks, tk=tk)
        cost = pl.CostEstimate(
            flops=flops, transcendentals=0,
            bytes_accessed=(M_p * d_model_p * (cbytes + obytes)
                            + 2 * d_model_p * d_ff_p * cbytes        # weights once
                            + (d_ff_p + d_model_p) * 4),
        )
        out = pl.pallas_call(
            kernel,
            out_shape=jax.ShapeDtypeStruct((M_p, d_model_p), out_dtype),
            grid_spec=pltpu.PrefetchScalarGridSpec(
                num_scalar_prefetch=0,
                grid=(n_rows,),
                in_specs=[
                    pl.BlockSpec((tm, d_model_p), lambda i: (i, 0)),        # x rows
                    pl.BlockSpec((d_model_p, d_ff_p), lambda i: (0, 0)),    # W1 (resident)
                    pl.BlockSpec((1, d_ff_p), lambda i: (0, 0)),            # b1 (resident)
                    pl.BlockSpec((d_ff_p, d_model_p), lambda i: (0, 0)),    # W2 (resident)
                    pl.BlockSpec((1, d_model_p), lambda i: (0, 0)),         # b2 (resident)
                ],
                out_specs=pl.BlockSpec((tm, d_model_p), lambda i: (i, 0)),
            ),
            compiler_params=pltpu.CompilerParams(
                dimension_semantics=("parallel",),
                vmem_limit_bytes=vmem_limit,
            ),
            cost_estimate=cost,
        )(x2d, p["w1p"], p["b1p"], p["w2p"], p["b2p"])
    else:
        n_k = d_ff_p // tk
        cost = pl.CostEstimate(
            flops=flops, transcendentals=0,
            bytes_accessed=(M_p * d_model_p * (cbytes + obytes)
                            # weights are re-streamed once per row tile:
                            + n_rows * (2 * d_model_p * d_ff_p * cbytes
                                        + (d_ff_p + d_model_p) * 4)),
        )
        out = pl.pallas_call(
            _ffn_stream_kernel,
            out_shape=jax.ShapeDtypeStruct((M_p, d_model_p), out_dtype),
            grid_spec=pltpu.PrefetchScalarGridSpec(
                num_scalar_prefetch=0,
                grid=(n_rows, n_k),
                in_specs=[
                    pl.BlockSpec((tm, d_model_p), lambda i, k: (i, 0)),   # x rows
                    pl.BlockSpec((d_model_p, tk), lambda i, k: (0, k)),   # W1 chunk
                    pl.BlockSpec((1, tk),         lambda i, k: (0, k)),   # b1 chunk
                    pl.BlockSpec((tk, d_model_p), lambda i, k: (k, 0)),   # W2 chunk
                    pl.BlockSpec((1, d_model_p),  lambda i, k: (0, 0)),   # b2
                ],
                out_specs=pl.BlockSpec((tm, d_model_p), lambda i, k: (i, 0)),
                scratch_shapes=[pltpu.VMEM((tm, d_model_p), jnp.float32)],
            ),
            compiler_params=pltpu.CompilerParams(
                dimension_semantics=("parallel", "arbitrary"),
                vmem_limit_bytes=vmem_limit,
            ),
            cost_estimate=cost,
        )(x2d, p["w1p"], p["b1p"], p["w2p"], p["b2p"])

    return out[:M, :d_model].reshape(batch, seq, d_model)


if __name__ == "__main__":
    # Small shapes consistent with the module's forward: [batch, seq, d_model]
    batch, seq, d_model, d_ff = 2, 8, 32, 64

    key = jax.random.PRNGKey(0)
    kx, kw1, kb1, kw2, kb2 = jax.random.split(key, 5)

    # Deterministic parameter init mimicking nn.Linear's uniform(-1/sqrt(fan_in))
    lim1 = 1.0 / (d_model ** 0.5)
    lim2 = 1.0 / (d_ff ** 0.5)
    x = jax.random.normal(kx, (batch, seq, d_model), dtype=jnp.float32)
    w1 = jax.random.uniform(kw1, (d_model, d_ff), minval=-lim1, maxval=lim1,
                            dtype=jnp.float32)
    b1 = jax.random.uniform(kb1, (d_ff,), minval=-lim1, maxval=lim1,
                            dtype=jnp.float32)
    w2 = jax.random.uniform(kw2, (d_ff, d_model), minval=-lim2, maxval=lim2,
                            dtype=jnp.float32)
    b2 = jax.random.uniform(kb2, (d_model,), minval=-lim2, maxval=lim2,
                            dtype=jnp.float32)

    # Reference using the same bf16-operand / f32-accumulate cast pattern.
    x2 = x.reshape(-1, d_model).astype(jnp.bfloat16)
    h_ref = jnp.maximum(
        jnp.dot(x2, w1.astype(jnp.bfloat16),
                preferred_element_type=jnp.float32) + b1, 0.0)
    ref = (jnp.dot(h_ref.astype(jnp.bfloat16), w2.astype(jnp.bfloat16),
                   preferred_element_type=jnp.float32) + b2
           ).reshape(batch, seq, d_model)
    ref_f32 = jnp.maximum(x @ w1 + b1, 0.0) @ w2 + b2

    # 1) Default path: weights VMEM-resident (single DMA, 1-D row grid).
    prepared = prepare_ffn_params(w1, b1, w2, b2)
    y = jax.block_until_ready(positionwise_ffn(x, prepared=prepared))
    assert y.shape == (batch, seq, d_model) and y.dtype == x.dtype
    assert prepared["use_resident"]
    assert jnp.allclose(y, ref, atol=1e-2, rtol=1e-2), "resident: mismatch vs bf16 ref"
    assert jnp.allclose(y, ref_f32, atol=5e-2, rtol=5e-2), "resident: mismatch vs f32 ref"

    # 2) Forced streaming fallback path (d_ff chunked over the grid) — exercises
    #    the accumulator / multi-tile grid code at these tiny shapes.
    prepared_s = prepare_ffn_params(w1, b1, w2, b2, force_stream_weights=True,
                                    tk=128, tm=8)
    y_s = jax.block_until_ready(positionwise_ffn(x, prepared=prepared_s))
    assert y_s.shape == (batch, seq, d_model) and y_s.dtype == x.dtype
    assert not prepared_s["use_resident"]
    assert jnp.allclose(y_s, ref, atol=1e-2, rtol=1e-2), "stream: mismatch vs bf16 ref"
    assert jnp.allclose(y_s, ref_f32, atol=5e-2, rtol=5e-2), "stream: mismatch vs f32 ref"

    print("KERNEL_OK")
</pallas_src>

<mosaic_0001>
module attributes {stable_mosaic.version = 11 : i64} {
  func.func @_ffn_resident_kernel(%arg0: i32, %arg1: memref<8x256xbf16, #tpu.memory_space<vmem>>, %arg2: memref<256x256xbf16, #tpu.memory_space<vmem>>, %arg3: memref<1x256xf32, #tpu.memory_space<vmem>>, %arg4: memref<256x256xbf16, #tpu.memory_space<vmem>>, %arg5: memref<1x256xf32, #tpu.memory_space<vmem>>, %arg6: memref<8x256xf32, #tpu.memory_space<vmem>>) attributes {dimension_semantics = [#tpu.dimension_semantics<parallel>], iteration_bounds = array<i64: 2>, scalar_prefetch = 0 : i64, scratch_operands = 0 : i64, tpu.core_type = #tpu.core_type<tc>, window_params = [{transform_indices = @transform_0, window_bounds = array<i64: 8, 256>}, {pipeline_mode = #tpu.pipeline_mode<synchronous>, transform_indices = @transform_1, window_bounds = array<i64: 256, 256>}, {pipeline_mode = #tpu.pipeline_mode<synchronous>, transform_indices = @transform_2, window_bounds = array<i64: 1, 256>}, {pipeline_mode = #tpu.pipeline_mode<synchronous>, transform_indices = @transform_3, window_bounds = array<i64: 256, 256>}, {pipeline_mode = #tpu.pipeline_mode<synchronous>, transform_indices = @transform_4, window_bounds = array<i64: 1, 256>}, {transform_indices = @transform_5, window_bounds = array<i64: 8, 256>}]} {
    %c0 = arith.constant 0 : index
    %c0_0 = arith.constant 0 : index
    %0 = vector.load %arg1[%c0, %c0_0] : memref<8x256xbf16, #tpu.memory_space<vmem>>, vector<8x256xbf16>
    %c0_1 = arith.constant 0 : index
    %c0_2 = arith.constant 0 : index
    %1 = vector.load %arg5[%c0_1, %c0_2] : memref<1x256xf32, #tpu.memory_space<vmem>>, vector<1x256xf32>
    %2 = vector.shape_cast %1 : vector<1x256xf32> to vector<1x256xf32>
    %3 = vector.broadcast %2 : vector<1x256xf32> to vector<8x256xf32>
    %c0_3 = arith.constant 0 : index
    %c0_4 = arith.constant 0 : index
    %4 = vector.load %arg2[%c0_3, %c0_4] : memref<256x256xbf16, #tpu.memory_space<vmem>>, vector<256x256xbf16>
    %cst = arith.constant dense<0.000000e+00> : vector<8x256xf32>
    %5 = tpu.matmul %0, %4, %cst {dimension_numbers = #tpu.dot_dimension_numbers<[1], [0], [0], [1], [0, 0, 1, 1], [], []>} : vector<8x256xbf16>, vector<256x256xbf16>, vector<8x256xf32> -> vector<8x256xf32>
    %c0_5 = arith.constant 0 : index
    %c0_6 = arith.constant 0 : index
    %6 = vector.load %arg3[%c0_5, %c0_6] : memref<1x256xf32, #tpu.memory_space<vmem>>, vector<1x256xf32>
    %7 = vector.broadcast %6 : vector<1x256xf32> to vector<8x256xf32>
    %8 = arith.addf %5, %7 : vector<8x256xf32>
    %cst_7 = arith.constant 0.000000e+00 : f32
    %9 = vector.broadcast %cst_7 : f32 to vector<8x256xf32>
    %10 = arith.maximumf %8, %9 : vector<8x256xf32>
    %11 = arith.truncf %10 : vector<8x256xf32> to vector<8x256xbf16>
    %c0_8 = arith.constant 0 : index
    %c0_9 = arith.constant 0 : index
    %12 = vector.load %arg4[%c0_8, %c0_9] : memref<256x256xbf16, #tpu.memory_space<vmem>>, vector<256x256xbf16>
    %cst_10 = arith.constant dense<0.000000e+00> : vector<8x256xf32>
    %13 = tpu.matmul %11, %12, %cst_10 {dimension_numbers = #tpu.dot_dimension_numbers<[1], [0], [0], [1], [0, 0, 1, 1], [], []>} : vector<8x256xbf16>, vector<256x256xbf16>, vector<8x256xf32> -> vector<8x256xf32>
    %14 = arith.addf %3, %13 : vector<8x256xf32>
    %c0_11 = arith.constant 0 : index
    %c0_12 = arith.constant 0 : index
    %15 = vector.load %arg6[%c0_11, %c0_12] : memref<8x256xf32, #tpu.memory_space<vmem>>, vector<8x256xf32>
    tpu.vector_store %arg6[%c0_11, %c0_12], %14 {strides = array<i32>} : memref<8x256xf32, #tpu.memory_space<vmem>>, vector<8x256xf32>,
    return
  }
  func.func @transform_0(%arg0: i32) -> (i32, i32) {
    %c0_i32 = arith.constant 0 : i32
    %c0_i32_0 = arith.constant 0 : i32
    return %arg0, %c0_i32 : i32, i32
  }
  func.func @transform_1(%arg0: i32) -> (i32, i32) {
    %c0_i32 = arith.constant 0 : i32
    %c0_i32_0 = arith.constant 0 : i32
    %c0_i32_1 = arith.constant 0 : i32
    return %c0_i32, %c0_i32_0 : i32, i32
  }
  func.func @transform_2(%arg0: i32) -> (i32, i32) {
    %c0_i32 = arith.constant 0 : i32
    %c0_i32_0 = arith.constant 0 : i32
    %c0_i32_1 = arith.constant 0 : i32
    return %c0_i32, %c0_i32_0 : i32, i32
  }
  func.func @transform_3(%arg0: i32) -> (i32, i32) {
    %c0_i32 = arith.constant 0 : i32
    %c0_i32_0 = arith.constant 0 : i32
    %c0_i32_1 = arith.constant 0 : i32
    return %c0_i32, %c0_i32_0 : i32, i32
  }
  func.func @transform_4(%arg0: i32) -> (i32, i32) {
    %c0_i32 = arith.constant 0 : i32
    %c0_i32_0 = arith.constant 0 : i32
    %c0_i32_1 = arith.constant 0 : i32
    return %c0_i32, %c0_i32_0 : i32, i32
  }
  func.func @transform_5(%arg0: i32) -> (i32, i32) {
    %c0_i32 = arith.constant 0 : i32
    %c0_i32_0 = arith.constant 0 : i32
    return %arg0, %c0_i32 : i32, i32
  }
}

</mosaic_0001>

<llo_original>
// kernel: tpu_custom_call.1
$region0: #{tpu_custom_call.1}
  #allocation0 [shape = 'u32[]', space=smem, size = 0x4, offset = 0x4, fixed_abs, tag = 'smem constant byte address 0x4 - core index']
  #allocation1 [shape = 'u32[144,128]{1,0:T(1,128)}', space=vmem, size = 0x12000, scoped, tag = 'internal scratch']
  %s0 = inlined_call_operand.hbm [shape: bf16[16,256], index: 0, kind: input, shape index: {}]
  %s1 = inlined_call_operand.hbm [shape: bf16[256,256], index: 1, kind: input, shape index: {}]
  %s2 = inlined_call_operand.vmem [shape: f32[1,256], index: 2, kind: input, shape index: {}]
  %s3 = inlined_call_operand.hbm [shape: bf16[256,256], index: 3, kind: input, shape index: {}]
  %s4 = inlined_call_operand.vmem [shape: f32[1,256], index: 4, kind: input, shape index: {}]
  %s5 = inlined_call_operand.hbm [shape: f32[16,256], index: 5, kind: output, shape index: {}]
  %s6 = sld [smem:[#allocation0]]
  $region65: #{tpu_custom_call.1} parent=0
    _
  %s8 = ssub.s32 1, %s6
  %s9 = scalar_select 0, %s8, %s6
  $region1: #{tpu_custom_call.1} parent=0
    #allocation2 [shape = 'u8[8192]{0}', space=vmem, size = 0x2000, scoped, tag = 'input window, operand 0']
    #allocation3 [shape = 's32[2]{0}', space=sflag, size = 0x8, scoped, tag = 'scoped memory for tpu_custom_call.1']
    #allocation4 [shape = 's32[2]{0}', space=sflag, size = 0x8, scoped, tag = 'scoped memory for tpu_custom_call.1']
    #allocation5 [shape = 'u8[131072]{0}', space=vmem, size = 0x20000, scoped, tag = 'input window, operand 1, single buffered']
    #allocation6 [shape = 's32[1]{0}', space=sflag, size = 0x4, scoped, tag = 'scoped memory for tpu_custom_call.1']
    #allocation7 [shape = 'u8[131072]{0}', space=vmem, size = 0x20000, scoped, tag = 'input window, operand 3, single buffered']
    #allocation8 [shape = 'u8[16384]{0}', space=vmem, size = 0x4000, scoped, tag = 'output window, operand 0']
    %10 = vsyncpa [#allocation3], 0
    %s11 = scalar_lea.sflag [#allocation3], 1
    %12 = vsyncpa %s11, 0
    %13 = vsyncpa [#allocation6], 0
    %14 = vsyncpa [#allocation4], 0
    %s15 = scalar_lea.sflag [#allocation4], 1
    %16 = vsyncpa %s15, 0
    loop: start=0, step=1, limit=4
    $region2: #{tpu_custom_call.1} parent=1 // loop_pre_header
      _
    $region3: #{tpu_custom_call.1} parent=1 // loop_header
      %s18 = sphi 0, %s22
      %p19 = scmp.ge.s32.totalorder %s18, 4
      %s28 = sphi 0, %s30
      %s31 = sphi 0, %s28
      %s32 = sphi 0, %s31
      %s48 = sphi 0, %s32
      %s52 = sphi 0, %s52
      %s54 = sphi 0, %s52
      %s55 = sphi 0, %s54
      %s69 = sphi 0, %s55
      %s73 = sphi 0, %s73
      %s75 = sphi 0, %s73
      %s76 = sphi 0, %s75
      %s90 = sphi 0, %s76
      %s94 = sphi 0, %s94
      %s96 = sphi 0, %s94
      %s97 = sphi 0, %s96
      %s111 = sphi 0, %s97
      %s115 = sphi 0, %s115
      %s117 = sphi 0, %s115
      %s118 = sphi 0, %s117
      %s132 = sphi 0, %s118
      %s138 = sphi 0, %s140
      %s141 = sphi 0, %s138
      %s142 = sphi 0, %s141
      %s158 = sphi 0, %s142
    $region4: #{tpu_custom_call.1} parent=1 // loop_header_branch
      %21 = sbr.rel (%p19) target = $region8
    $region5: #{tpu_custom_call.1} parent=1 // loop_body
      %s23 = ssub.s32 %s18, 1
      %s24 = ssub.s32 %s18, 2
      %s25 = sadd.s32 %s18, 1
      %s26 = ssub.s32 %s18, %s25
      %p27 = scmp.eq.s32.totalorder %s26, 0
      %s29 = sadd.s32 %s28, 1
      %s30 = scalar_select %p27, %s28, %s29
      %p33 = pneg %p27
      %p34 = scmp.eq.s32.totalorder %s18, 1
      %p35 = por %p33, %p34
      %p36 = scmp.ne.s32.totalorder %s28, %s31
      %p37 = scmp.eq.s32.totalorder %s18, 0
      %p38 = por %p36, %p37
      %p39 = scmp.ne.s32.totalorder %s28, %s31
      %p40 = scmp.eq.s32.totalorder %s23, 1
      %p41 = por %p39, %p40
      %p42 = scmp.ne.s32.totalorder %s31, %s32
      %p43 = scmp.eq.s32.totalorder %s23, 0
      %p44 = por %p42, %p43
      %p45 = scmp.ne.s32.totalorder %s31, %s32
      %p46 = scmp.eq.s32.totalorder %s24, 1
      %p47 = por %p45, %p46
      %p49 = scmp.ne.s32.totalorder %s32, %s48
      %p50 = scmp.eq.s32.totalorder %s24, 0
      %p51 = por %p49, %p50
      %s53 = sadd.s32 %s52, 1
      %p56 = scmp.eq.s32.totalorder %s18, 1
      %p57 = scmp.ne.s32.totalorder %s52, %s54
      %p58 = scmp.eq.s32.totalorder %s18, 0
      %p59 = por %p57, %p58
      %p60 = scmp.ne.s32.totalorder %s52, %s54
      %p61 = scmp.eq.s32.totalorder %s23, 1
      %p62 = por %p60, %p61
      %p63 = scmp.ne.s32.totalorder %s54, %s55
      %p64 = scmp.eq.s32.totalorder %s23, 0
      %p65 = por %p63, %p64
      %p66 = scmp.ne.s32.totalorder %s54, %s55
      %p67 = scmp.eq.s32.totalorder %s24, 1
      %p68 = por %p66, %p67
      %p70 = scmp.ne.s32.totalorder %s55, %s69
      %p71 = scmp.eq.s32.totalorder %s24, 0
      %p72 = por %p70, %p71
      %s74 = sadd.s32 %s73, 1
      %p77 = scmp.eq.s32.totalorder %s18, 1
      %p78 = scmp.ne.s32.totalorder %s73, %s75
      %p79 = scmp.eq.s32.totalorder %s18, 0
      %p80 = por %p78, %p79
      %p81 = scmp.ne.s32.totalorder %s73, %s75
      %p82 = scmp.eq.s32.totalorder %s23, 1
      %p83 = por %p81, %p82
      %p84 = scmp.ne.s32.totalorder %s75, %s76
      %p85 = scmp.eq.s32.totalorder %s23, 0
      %p86 = por %p84, %p85
      %p87 = scmp.ne.s32.totalorder %s75, %s76
      %p88 = scmp.eq.s32.totalorder %s24, 1
      %p89 = por %p87, %p88
      %p91 = scmp.ne.s32.totalorder %s76, %s90
      %p92 = scmp.eq.s32.totalorder %s24, 0
      %p93 = por %p91, %p92
      %s95 = sadd.s32 %s94, 1
      %p98 = scmp.eq.s32.totalorder %s18, 1
      %p99 = scmp.ne.s32.totalorder %s94, %s96
      %p100 = scmp.eq.s32.totalorder %s18, 0
      %p101 = por %p99, %p100
      %p102 = scmp.ne.s32.totalorder %s94, %s96
      %p103 = scmp.eq.s32.totalorder %s23, 1
      %p104 = por %p102, %p103
      %p105 = scmp.ne.s32.totalorder %s96, %s97
      %p106 = scmp.eq.s32.totalorder %s23, 0
      %p107 = por %p105, %p106
      %p108 = scmp.ne.s32.totalorder %s96, %s97
      %p109 = scmp.eq.s32.totalorder %s24, 1
      %p110 = por %p108, %p109
      %p112 = scmp.ne.s32.totalorder %s97, %s111
      %p113 = scmp.eq.s32.totalorder %s24, 0
      %p114 = por %p112, %p113
      %s116 = sadd.s32 %s115, 1
      %p119 = scmp.eq.s32.totalorder %s18, 1
      %p120 = scmp.ne.s32.totalorder %s115, %s117
      %p121 = scmp.eq.s32.totalorder %s18, 0
      %p122 = por %p120, %p121
      %p123 = scmp.ne.s32.totalorder %s115, %s117
      %p124 = scmp.eq.s32.totalorder %s23, 1
      %p125 = por %p123, %p124
      %p126 = scmp.ne.s32.totalorder %s117, %s118
      %p127 = scmp.eq.s32.totalorder %s23, 0
      %p128 = por %p126, %p127
      %p129 = scmp.ne.s32.totalorder %s117, %s118
      %p130 = scmp.eq.s32.totalorder %s24, 1
      %p131 = por %p129, %p130
      %p133 = scmp.ne.s32.totalorder %s118, %s132
      %p134 = scmp.eq.s32.totalorder %s24, 0
      %p135 = por %p133, %p134
      %s136 = ssub.s32 %s18, %s25
      %p137 = scmp.eq.s32.totalorder %s136, 0
      %s139 = sadd.s32 %s138, 1
      %s140 = scalar_select %p137, %s138, %s139
      %p143 = pneg %p137
      %p144 = scmp.eq.s32.totalorder %s18, 1
      %p145 = por %p143, %p144
      %p146 = scmp.ne.s32.totalorder %s138, %s141
      %p147 = scmp.eq.s32.totalorder %s18, 0
      %p148 = por %p146, %p147
      %p149 = scmp.ne.s32.totalorder %s138, %s141
      %p150 = scmp.eq.s32.totalorder %s23, 1
      %p151 = por %p149, %p150
      %p152 = scmp.ne.s32.totalorder %s141, %s142
      %p153 = scmp.eq.s32.totalorder %s23, 0
      %p154 = por %p152, %p153
      %p155 = scmp.ne.s32.totalorder %s141, %s142
      %p156 = scmp.eq.s32.totalorder %s24, 1
      %p157 = por %p155, %p156
      %p159 = scmp.ne.s32.totalorder %s142, %s158
      %p160 = scmp.eq.s32.totalorder %s24, 0
      %p161 = por %p159, %p160
      %p162 = scmp.le.s32.totalorder 1, %s18
      %p163 = scmp.lt.s32.totalorder %s18, 3
      %p164 = pnand %p162, %p163
      %p165 = pneg %p164
      // Predicated region
      $region9: #{tpu_custom_call.1} parent=5 // pred_check
        _
      $region10: #{tpu_custom_call.1} parent=5 // pred_check_branch
        %167 = sbr.rel (%p164) target = $region12
      $region11: #{tpu_custom_call.1} parent=5 // pred_region
        %s168 = ssub.s32 %s18, 1
        // Predicated region
        $region13: #{tpu_custom_call.1} parent=11 // pred_check
          %p169 = pneg %p65
        $region14: #{tpu_custom_call.1} parent=11 // pred_check_branch
          %171 = sbr.rel (%p169) target = $region16
        $region15: #{tpu_custom_call.1} parent=11 // pred_region
          %s173 = ssub.s32 4096, 4096
          %174 = vsyncadd [#allocation6], %s173
          %s175 = sshll.u32 [#allocation5], 4
          %s176 = int_to_ptr.vmem [resolvable:$true] %s175
          %181 = dma.hbm_to_vmem [thread:$0]  %s1, 4096, %s176, [#allocation6], 128, 128, 8
        $region16: #{tpu_custom_call.1} parent=11 // pred_fallthru
          _
        // Predicated region
        $region17: #{tpu_custom_call.1} parent=11 // pred_check
          %p182 = pneg %p86
        $region18: #{tpu_custom_call.1} parent=11 // pred_check_branch
          %184 = sbr.rel (%p182) target = $region20
        $region19: #{tpu_custom_call.1} parent=11 // pred_region
          _
        $region20: #{tpu_custom_call.1} parent=11 // pred_fallthru
          _
        // Predicated region
        $region21: #{tpu_custom_call.1} parent=11 // pred_check
          %p185 = pneg %p107
        $region22: #{tpu_custom_call.1} parent=11 // pred_check_branch
          %187 = sbr.rel (%p185) target = $region24
        $region23: #{tpu_custom_call.1} parent=11 // pred_region
          %s189 = ssub.s32 4096, 4096
          %190 = vsyncadd [#allocation6], %s189
          %s191 = sshll.u32 [#allocation7], 4
          %s192 = int_to_ptr.vmem [resolvable:$true] %s191
          %197 = dma.hbm_to_vmem [thread:$0]  %s3, 4096, %s192, [#allocation6], 128, 128, 8
        $region24: #{tpu_custom_call.1} parent=11 // pred_fallthru
          _
        // Predicated region
        $region25: #{tpu_custom_call.1} parent=11 // pred_check
          %p198 = pneg %p128
        $region26: #{tpu_custom_call.1} parent=11 // pred_check_branch
          %200 = sbr.rel (%p198) target = $region28
        $region27: #{tpu_custom_call.1} parent=11 // pred_region
          _
        $region28: #{tpu_custom_call.1} parent=11 // pred_fallthru
          _
      $region12: #{tpu_custom_call.1} parent=5 // pred_fallthru
        _
      %p201 = scmp.lt.s32.totalorder %s18, 2
      // Predicated region
      $region29: #{tpu_custom_call.1} parent=5 // pred_check
        %p202 = pneg %p201
      $region30: #{tpu_custom_call.1} parent=5 // pred_check_branch
        %204 = sbr.rel (%p202) target = $region32
      $region31: #{tpu_custom_call.1} parent=5 // pred_region
        // Predicated region
        $region33: #{tpu_custom_call.1} parent=31 // pred_check
          %p205 = pneg %p38
        $region34: #{tpu_custom_call.1} parent=31 // pred_check_branch
          %207 = sbr.rel (%p205) target = $region36
        $region35: #{tpu_custom_call.1} parent=31 // pred_region
          %s208 = sand.u32 %s28, 1
          %s209 = scalar_lea.sflag [#allocation3], %s208
          %s210 = sand.u32 %s28, 1
          %s211 = smul.addr %s210, 8
          %s212 = scalar_lea.vmem [#allocation2], %s211
          %s214 = ssub.s32 128, 128
          %215 = vsyncadd %s209, %s214
          %s216 = smul.addr %s18, 2
          %s217 = smul.addr %s216, 64
          %s218 = scalar_lea.hbm %s0, %s217
          %s220 = sshll.u32 %s212, 4
          %s221 = int_to_ptr.vmem [resolvable:$true] %s220
          %223 = dma.hbm_to_vmem [thread:$0]  %s218, 128, %s221, %s209
        $region36: #{tpu_custom_call.1} parent=31 // pred_fallthru
          _
      $region32: #{tpu_custom_call.1} parent=5 // pred_fallthru
        _
      %p224 = scmp.le.s32.totalorder 1, %s18
      %p225 = scmp.lt.s32.totalorder %s18, 3
      %p226 = pnand %p224, %p225
      %p227 = pneg %p226
      // Predicated region
      $region37: #{tpu_custom_call.1} parent=5 // pred_check
        _
      $region38: #{tpu_custom_call.1} parent=5 // pred_check_branch
        %229 = sbr.rel (%p226) target = $region40
      $region39: #{tpu_custom_call.1} parent=5 // pred_region
        %s230 = ssub.s32 %s18, 1
        %s231 = sand.u32 %s31, 1
        %s232 = scalar_lea.sflag [#allocation3], %s231
        %s233 = sand.u32 %s31, 1
        %s234 = smul.addr %s233, 8
        %s235 = scalar_lea.vmem [#allocation2], %s234
        // Predicated region
        $region41: #{tpu_custom_call.1} parent=39 // pred_check
          %p236 = pneg %p44
        $region42: #{tpu_custom_call.1} parent=39 // pred_check_branch
          %238 = sbr.rel (%p236) target = $region44
        $region43: #{tpu_custom_call.1} parent=39 // pred_region
          %239 = dma.done %s232, 128
        $region44: #{tpu_custom_call.1} parent=39 // pred_fallthru
          _
        // Predicated region
        $region45: #{tpu_custom_call.1} parent=39 // pred_check
          %p240 = pneg %p65
        $region46: #{tpu_custom_call.1} parent=39 // pred_check_branch
          %242 = sbr.rel (%p240) target = $region48
        $region47: #{tpu_custom_call.1} parent=39 // pred_region
          %243 = dma.done [#allocation6], 4096
        $region48: #{tpu_custom_call.1} parent=39 // pred_fallthru
          _
        // Predicated region
        $region49: #{tpu_custom_call.1} parent=39 // pred_check
          %p244 = pneg %p107
        $region50: #{tpu_custom_call.1} parent=39 // pred_check_branch
          %246 = sbr.rel (%p244) target = $region52
        $region51: #{tpu_custom_call.1} parent=39 // pred_region
          %247 = dma.done [#allocation6], 4096
        $region52: #{tpu_custom_call.1} parent=39 // pred_fallthru
          _
        %s248 = sand.u32 %s31, 1
        %s249 = scalar_lea.sflag [#allocation3], %s248
        %s250 = sand.u32 %s31, 1
        %s251 = smul.addr %s250, 8
        %s252 = scalar_lea.vmem [#allocation2], %s251
        %p253 = pneg %p44
        %p254 = pneg %p41
        %p255 = pneg %p65
        %p256 = pneg %p62
        %p257 = pneg %p86
        %p258 = pneg %p83
        %p259 = pneg %p107
        %p260 = pneg %p104
        %p261 = pneg %p128
        %p262 = pneg %p125
        %p263 = pneg %p154
        %p264 = pneg %p151
        %s265 = sand.u32 %s141, 1
        %s266 = scalar_lea.sflag [#allocation4], %s265
        %s267 = sand.u32 %s141, 1
        %s268 = smul.addr %s267, 16
        %s269 = scalar_lea.vmem [#allocation8], %s268
        %v270 = vld [vmem:[%s235] sm:$0xff]
        %v271 = vld [vmem:[%s4] sm:$0x3]
        %v273 = vlaneseq
        %v274 = vshrl.u32 %v273, 7
        %v275 = vsub.s32 0, %v274
        %v276 = vrot.slane %v271, %v275
        %v277 = vlaneseq
        %v278 = vshrl.u32 %v277, 7
        %v279 = vsub.s32 1, %v278
        %v280 = vrot.slane %v271, %v279
        %v283 = vld [vmem:[#allocation5] sm:$0xff]
        %v284 = vld [vmem:[#allocation5 + $0x8] sm:$0xff]
        %v285 = vld [vmem:[#allocation5 + $0x10] sm:$0xff]
        %v286 = vld [vmem:[#allocation5 + $0x18] sm:$0xff]
        %v287 = vld [vmem:[#allocation5 + $0x20] sm:$0xff]
        %v288 = vld [vmem:[#allocation5 + $0x28] sm:$0xff]
        %v289 = vld [vmem:[#allocation5 + $0x30] sm:$0xff]
        %v290 = vld [vmem:[#allocation5 + $0x38] sm:$0xff]
        %v291 = vld [vmem:[#allocation5 + $0x40] sm:$0xff]
        %v292 = vld [vmem:[#allocation5 + $0x48] sm:$0xff]
        %v293 = vld [vmem:[#allocation5 + $0x50] sm:$0xff]
        %v294 = vld [vmem:[#allocation5 + $0x58] sm:$0xff]
        %v295 = vld [vmem:[#allocation5 + $0x60] sm:$0xff]
        %v296 = vld [vmem:[#allocation5 + $0x68] sm:$0xff]
        %v297 = vld [vmem:[#allocation5 + $0x70] sm:$0xff]
        %v298 = vld [vmem:[#allocation5 + $0x78] sm:$0xff]
        %v299 = vld [vmem:[#allocation5 + $0x80] sm:$0xff]
        %v300 = vld [vmem:[#allocation5 + $0x88] sm:$0xff]
        %v301 = vld [vmem:[#allocation5 + $0x90] sm:$0xff]
        %v302 = vld [vmem:[#allocation5 + $0x98] sm:$0xff]
        %v303 = vld [vmem:[#allocation5 + $0xa0] sm:$0xff]
        %v304 = vld [vmem:[#allocation5 + $0xa8] sm:$0xff]
        %v305 = vld [vmem:[#allocation5 + $0xb0] sm:$0xff]
        %v306 = vld [vmem:[#allocation5 + $0xb8] sm:$0xff]
        %v307 = vld [vmem:[#allocation5 + $0xc0] sm:$0xff]
        %v308 = vld [vmem:[#allocation5 + $0xc8] sm:$0xff]
        %v309 = vld [vmem:[#allocation5 + $0xd0] sm:$0xff]
        %v310 = vld [vmem:[#allocation5 + $0xd8] sm:$0xff]
        %v311 = vld [vmem:[#allocation5 + $0xe0] sm:$0xff]
        %v312 = vld [vmem:[#allocation5 + $0xe8] sm:$0xff]
        %v313 = vld [vmem:[#allocation5 + $0xf0] sm:$0xff]
        %v314 = vld [vmem:[#allocation5 + $0xf8] sm:$0xff]
        %v315 = vld [vmem:[%s2] sm:$0x3]
        %v317 = vlaneseq
        %v318 = vshrl.u32 %v317, 7
        %v319 = vsub.s32 0, %v318
        %v320 = vrot.slane %v315, %v319
        %v321 = vlaneseq
        %v322 = vshrl.u32 %v321, 7
        %v323 = vsub.s32 1, %v322
        %v324 = vrot.slane %v315, %v323
        %v328 = vunpack.c.l.b16 %v270
        %v329 = vunpack.c.h.b16 %v270
        %v330 = vpack.c.b16 %v328, %v328
        %v331 = vpack.c.b16 %v329, %v329
        %v366 = vunpack.c.l.b16 %v283
        %v367 = vunpack.c.h.b16 %v283
        %v368 = vunpack.c.l.b16 %v284
        %v369 = vunpack.c.h.b16 %v284
        %v370 = vunpack.c.l.b16 %v285
        %v371 = vunpack.c.h.b16 %v285
        %v372 = vunpack.c.l.b16 %v286
        %v373 = vunpack.c.h.b16 %v286
        %v374 = vunpack.c.l.b16 %v287
        %v375 = vunpack.c.h.b16 %v287
        %v376 = vunpack.c.l.b16 %v288
        %v377 = vunpack.c.h.b16 %v288
        %v378 = vunpack.c.l.b16 %v289
        %v379 = vunpack.c.h.b16 %v289
        %v380 = vunpack.c.l.b16 %v290
        %v381 = vunpack.c.h.b16 %v290
        %v382 = vunpack.c.l.b16 %v291
        %v383 = vunpack.c.h.b16 %v291
        %v384 = vunpack.c.l.b16 %v292
        %v385 = vunpack.c.h.b16 %v292
        %v386 = vunpack.c.l.b16 %v293
        %v387 = vunpack.c.h.b16 %v293
        %v388 = vunpack.c.l.b16 %v294
        %v389 = vunpack.c.h.b16 %v294
        %v390 = vunpack.c.l.b16 %v295
        %v391 = vunpack.c.h.b16 %v295
        %v392 = vunpack.c.l.b16 %v296
        %v393 = vunpack.c.h.b16 %v296
        %v394 = vunpack.c.l.b16 %v297
        %v395 = vunpack.c.h.b16 %v297
        %v396 = vunpack.c.l.b16 %v298
        %v397 = vunpack.c.h.b16 %v298
        %v398 = vunpack.c.l.b16 %v299
        %v399 = vunpack.c.h.b16 %v299
        %v400 = vunpack.c.l.b16 %v300
        %v401 = vunpack.c.h.b16 %v300
        %v402 = vunpack.c.l.b16 %v301
        %v403 = vunpack.c.h.b16 %v301
        %v404 = vunpack.c.l.b16 %v302
        %v405 = vunpack.c.h.b16 %v302
        %v406 = vunpack.c.l.b16 %v303
        %v407 = vunpack.c.h.b16 %v303
        %v408 = vunpack.c.l.b16 %v304
        %v409 = vunpack.c.h.b16 %v304
        %v410 = vunpack.c.l.b16 %v305
        %v411 = vunpack.c.h.b16 %v305
        %v412 = vunpack.c.l.b16 %v306
        %v413 = vunpack.c.h.b16 %v306
        %v414 = vunpack.c.l.b16 %v307
        %v415 = vunpack.c.h.b16 %v307
        %v416 = vunpack.c.l.b16 %v308
        %v417 = vunpack.c.h.b16 %v308
        %v418 = vunpack.c.l.b16 %v309
        %v419 = vunpack.c.h.b16 %v309
        %v420 = vunpack.c.l.b16 %v310
        %v421 = vunpack.c.h.b16 %v310
        %v422 = vunpack.c.l.b16 %v311
        %v423 = vunpack.c.h.b16 %v311
        %v424 = vunpack.c.l.b16 %v312
        %v425 = vunpack.c.h.b16 %v312
        %v426 = vunpack.c.l.b16 %v313
        %v427 = vunpack.c.h.b16 %v313
        %v428 = vunpack.c.l.b16 %v314
        %v429 = vunpack.c.h.b16 %v314
        %v430 = vpack.c.b16 %v368, %v366
        %v431 = vpack.c.b16 %v369, %v367
        %v432 = vpack.c.b16 %v372, %v370
        %v433 = vpack.c.b16 %v373, %v371
        %v434 = vpack.c.b16 %v376, %v374
        %v435 = vpack.c.b16 %v377, %v375
        %v436 = vpack.c.b16 %v380, %v378
        %v437 = vpack.c.b16 %v381, %v379
        %v438 = vpack.c.b16 %v384, %v382
        %v439 = vpack.c.b16 %v385, %v383
        %v440 = vpack.c.b16 %v388, %v386
        %v441 = vpack.c.b16 %v389, %v387
        %v442 = vpack.c.b16 %v392, %v390
        %v443 = vpack.c.b16 %v393, %v391
        %v444 = vpack.c.b16 %v396, %v394
        %v445 = vpack.c.b16 %v397, %v395
        %v446 = vpack.c.b16 %v400, %v398
        %v447 = vpack.c.b16 %v401, %v399
        %v448 = vpack.c.b16 %v404, %v402
        %v449 = vpack.c.b16 %v405, %v403
        %v450 = vpack.c.b16 %v408, %v406
        %v451 = vpack.c.b16 %v409, %v407
        %v452 = vpack.c.b16 %v412, %v410
        %v453 = vpack.c.b16 %v413, %v411
        %v454 = vpack.c.b16 %v416, %v414
        %v455 = vpack.c.b16 %v417, %v415
        %v456 = vpack.c.b16 %v420, %v418
        %v457 = vpack.c.b16 %v421, %v419
        %v458 = vpack.c.b16 %v424, %v422
        %v459 = vpack.c.b16 %v425, %v423
        %v460 = vpack.c.b16 %v428, %v426
        %v461 = vpack.c.b16 %v429, %v427
        %494 = vmatprep.subr.bf16.mxu0 %v431
        %495 = vmatpush1.bf16.msra.mxu0 %v430
        %496 = vmatprep.subr.bf16.mxu0 %v433
        %497 = vmatpush1.bf16.msra.mxu0 %v432
        %498 = vmatprep.subr.bf16.mxu0 %v435
        %499 = vmatpush1.bf16.msra.mxu0 %v434
        %500 = vmatprep.subr.bf16.mxu0 %v437
        %501 = vmatpush1.bf16.msra.mxu0 %v436
        %502 = vmatprep.subr.bf16.mxu0 %v439
        %503 = vmatpush1.bf16.msra.mxu0 %v438
        %504 = vmatprep.subr.bf16.mxu0 %v441
        %505 = vmatpush1.bf16.msra.mxu0 %v440
        %506 = vmatprep.subr.bf16.mxu0 %v443
        %507 = vmatpush1.bf16.msra.mxu0 %v442
        %508 = vmatprep.subr.bf16.mxu0 %v445
        %509 = vmatpush1.bf16.msra.mxu0 %v444
        %510 = vmatprep.subr.bf16.mxu0 %v447
        %511 = vmatpush1.bf16.msra.mxu0 %v446
        %512 = vmatprep.subr.bf16.mxu0 %v449
        %513 = vmatpush1.bf16.msra.mxu0 %v448
        %514 = vmatprep.subr.bf16.mxu0 %v451
        %515 = vmatpush1.bf16.msra.mxu0 %v450
        %516 = vmatprep.subr.bf16.mxu0 %v453
        %517 = vmatpush1.bf16.msra.mxu0 %v452
        %518 = vmatprep.subr.bf16.mxu0 %v455
        %519 = vmatpush1.bf16.msra.mxu0 %v454
        %520 = vmatprep.subr.bf16.mxu0 %v457
        %521 = vmatpush1.bf16.msra.mxu0 %v456
        %522 = vmatprep.subr.bf16.mxu0 %v459
        %523 = vmatpush1.bf16.msra.mxu0 %v458
        %524 = vmatprep.subr.bf16.mxu0 %v461
        %525 = vmatpush1.bf16.msra.mxu0 %v460
        %526 = vmatprep.mubr.bf16.mxu0 %v331
        %527 = vmatmul.mubr.bf16.gmra.mrb[0].mxu0 %v330
        %v528 = vpop.f32.mrb[0].mxu0
        %v529 = vadd.f32 %v320, %v528
        %v530 = vpop.f32.mrb[0].mxu0
        %v531 = vadd.f32 %v324, %v530
        %v532 = vpop.f32.mrb[0].mxu0
        %v533 = vpop.f32.mrb[0].mxu0
        %534 = vdwg.mxu0
        %v535 = vmax.f32 %v529, 0.0
        %v536 = vmax.f32 %v531, 0.0
        %v537 = vpack.c.bf16 %v535, %v535
        %v538 = vpack.c.bf16 %v536, %v536
        %v539 = vld [vmem:[#allocation7] sm:$0xff]
        %v540 = vld [vmem:[#allocation7 + $0x8] sm:$0xff]
        %v541 = vld [vmem:[#allocation7 + $0x10] sm:$0xff]
        %v542 = vld [vmem:[#allocation7 + $0x18] sm:$0xff]
        %v543 = vld [vmem:[#allocation7 + $0x20] sm:$0xff]
        %v544 = vld [vmem:[#allocation7 + $0x28] sm:$0xff]
        %v545 = vld [vmem:[#allocation7 + $0x30] sm:$0xff]
        %v546 = vld [vmem:[#allocation7 + $0x38] sm:$0xff]
        %v547 = vld [vmem:[#allocation7 + $0x40] sm:$0xff]
        %v548 = vld [vmem:[#allocation7 + $0x48] sm:$0xff]
        %v549 = vld [vmem:[#allocation7 + $0x50] sm:$0xff]
        %v550 = vld [vmem:[#allocation7 + $0x58] sm:$0xff]
        %v551 = vld [vmem:[#allocation7 + $0x60] sm:$0xff]
        %v552 = vld [vmem:[#allocation7 + $0x68] sm:$0xff]
        %v553 = vld [vmem:[#allocation7 + $0x70] sm:$0xff]
        %v554 = vld [vmem:[#allocation7 + $0x78] sm:$0xff]
        %v555 = vld [vmem:[#allocation7 + $0x80] sm:$0xff]
        %v556 = vld [vmem:[#allocation7 + $0x88] sm:$0xff]
        %v557 = vld [vmem:[#allocation7 + $0x90] sm:$0xff]
        %v558 = vld [vmem:[#allocation7 + $0x98] sm:$0xff]
        %v559 = vld [vmem:[#allocation7 + $0xa0] sm:$0xff]
        %v560 = vld [vmem:[#allocation7 + $0xa8] sm:$0xff]
        %v561 = vld [vmem:[#allocation7 + $0xb0] sm:$0xff]
        %v562 = vld [vmem:[#allocation7 + $0xb8] sm:$0xff]
        %v563 = vld [vmem:[#allocation7 + $0xc0] sm:$0xff]
        %v564 = vld [vmem:[#allocation7 + $0xc8] sm:$0xff]
        %v565 = vld [vmem:[#allocation7 + $0xd0] sm:$0xff]
        %v566 = vld [vmem:[#allocation7 + $0xd8] sm:$0xff]
        %v567 = vld [vmem:[#allocation7 + $0xe0] sm:$0xff]
        %v568 = vld [vmem:[#allocation7 + $0xe8] sm:$0xff]
        %v569 = vld [vmem:[#allocation7 + $0xf0] sm:$0xff]
        %v570 = vld [vmem:[#allocation7 + $0xf8] sm:$0xff]
        %v603 = vunpack.c.l.b16 %v539
        %v604 = vunpack.c.h.b16 %v539
        %v605 = vunpack.c.l.b16 %v540
        %v606 = vunpack.c.h.b16 %v540
        %v607 = vunpack.c.l.b16 %v541
        %v608 = vunpack.c.h.b16 %v541
        %v609 = vunpack.c.l.b16 %v542
        %v610 = vunpack.c.h.b16 %v542
        %v611 = vunpack.c.l.b16 %v543
        %v612 = vunpack.c.h.b16 %v543
        %v613 = vunpack.c.l.b16 %v544
        %v614 = vunpack.c.h.b16 %v544
        %v615 = vunpack.c.l.b16 %v545
        %v616 = vunpack.c.h.b16 %v545
        %v617 = vunpack.c.l.b16 %v546
        %v618 = vunpack.c.h.b16 %v546
        %v619 = vunpack.c.l.b16 %v547
        %v620 = vunpack.c.h.b16 %v547
        %v621 = vunpack.c.l.b16 %v548
        %v622 = vunpack.c.h.b16 %v548
        %v623 = vunpack.c.l.b16 %v549
        %v624 = vunpack.c.h.b16 %v549
        %v625 = vunpack.c.l.b16 %v550
        %v626 = vunpack.c.h.b16 %v550
        %v627 = vunpack.c.l.b16 %v551
        %v628 = vunpack.c.h.b16 %v551
        %v629 = vunpack.c.l.b16 %v552
        %v630 = vunpack.c.h.b16 %v552
        %v631 = vunpack.c.l.b16 %v553
        %v632 = vunpack.c.h.b16 %v553
        %v633 = vunpack.c.l.b16 %v554
        %v634 = vunpack.c.h.b16 %v554
        %v635 = vunpack.c.l.b16 %v555
        %v636 = vunpack.c.h.b16 %v555
        %v637 = vunpack.c.l.b16 %v556
        %v638 = vunpack.c.h.b16 %v556
        %v639 = vunpack.c.l.b16 %v557
        %v640 = vunpack.c.h.b16 %v557
        %v641 = vunpack.c.l.b16 %v558
        %v642 = vunpack.c.h.b16 %v558
        %v643 = vunpack.c.l.b16 %v559
        %v644 = vunpack.c.h.b16 %v559
        %v645 = vunpack.c.l.b16 %v560
        %v646 = vunpack.c.h.b16 %v560
        %v647 = vunpack.c.l.b16 %v561
        %v648 = vunpack.c.h.b16 %v561
        %v649 = vunpack.c.l.b16 %v562
        %v650 = vunpack.c.h.b16 %v562
        %v651 = vunpack.c.l.b16 %v563
        %v652 = vunpack.c.h.b16 %v563
        %v653 = vunpack.c.l.b16 %v564
        %v654 = vunpack.c.h.b16 %v564
        %v655 = vunpack.c.l.b16 %v565
        %v656 = vunpack.c.h.b16 %v565
        %v657 = vunpack.c.l.b16 %v566
        %v658 = vunpack.c.h.b16 %v566
        %v659 = vunpack.c.l.b16 %v567
        %v660 = vunpack.c.h.b16 %v567
        %v661 = vunpack.c.l.b16 %v568
        %v662 = vunpack.c.h.b16 %v568
        %v663 = vunpack.c.l.b16 %v569
        %v664 = vunpack.c.h.b16 %v569
        %v665 = vunpack.c.l.b16 %v570
        %v666 = vunpack.c.h.b16 %v570
        %v667 = vpack.c.b16 %v605, %v603
        %v668 = vpack.c.b16 %v606, %v604
        %v669 = vpack.c.b16 %v609, %v607
        %v670 = vpack.c.b16 %v610, %v608
        %v671 = vpack.c.b16 %v613, %v611
        %v672 = vpack.c.b16 %v614, %v612
        %v673 = vpack.c.b16 %v617, %v615
        %v674 = vpack.c.b16 %v618, %v616
        %v675 = vpack.c.b16 %v621, %v619
        %v676 = vpack.c.b16 %v622, %v620
        %v677 = vpack.c.b16 %v625, %v623
        %v678 = vpack.c.b16 %v626, %v624
        %v679 = vpack.c.b16 %v629, %v627
        %v680 = vpack.c.b16 %v630, %v628
        %v681 = vpack.c.b16 %v633, %v631
        %v682 = vpack.c.b16 %v634, %v632
        %v683 = vpack.c.b16 %v637, %v635
        %v684 = vpack.c.b16 %v638, %v636
        %v685 = vpack.c.b16 %v641, %v639
        %v686 = vpack.c.b16 %v642, %v640
        %v687 = vpack.c.b16 %v645, %v643
        %v688 = vpack.c.b16 %v646, %v644
        %v689 = vpack.c.b16 %v649, %v647
        %v690 = vpack.c.b16 %v650, %v648
        %v691 = vpack.c.b16 %v653, %v651
        %v692 = vpack.c.b16 %v654, %v652
        %v693 = vpack.c.b16 %v657, %v655
        %v694 = vpack.c.b16 %v658, %v656
        %v695 = vpack.c.b16 %v661, %v659
        %v696 = vpack.c.b16 %v662, %v660
        %v697 = vpack.c.b16 %v665, %v663
        %v698 = vpack.c.b16 %v666, %v664
        %731 = vmatprep.subr.bf16.mxu0 %v668
        %732 = vmatpush1.bf16.msra.mxu0 %v667
        %733 = vmatprep.subr.bf16.mxu0 %v670
        %734 = vmatpush1.bf16.msra.mxu0 %v669
        %735 = vmatprep.subr.bf16.mxu0 %v672
        %736 = vmatpush1.bf16.msra.mxu0 %v671
        %737 = vmatprep.subr.bf16.mxu0 %v674
        %738 = vmatpush1.bf16.msra.mxu0 %v673
        %739 = vmatprep.subr.bf16.mxu0 %v676
        %740 = vmatpush1.bf16.msra.mxu0 %v675
        %741 = vmatprep.subr.bf16.mxu0 %v678
        %742 = vmatpush1.bf16.msra.mxu0 %v677
        %743 = vmatprep.subr.bf16.mxu0 %v680
        %744 = vmatpush1.bf16.msra.mxu0 %v679
        %745 = vmatprep.subr.bf16.mxu0 %v682
        %746 = vmatpush1.bf16.msra.mxu0 %v681
        %747 = vmatprep.subr.bf16.mxu0 %v684
        %748 = vmatpush1.bf16.msra.mxu0 %v683
        %749 = vmatprep.subr.bf16.mxu0 %v686
        %750 = vmatpush1.bf16.msra.mxu0 %v685
        %751 = vmatprep.subr.bf16.mxu0 %v688
        %752 = vmatpush1.bf16.msra.mxu0 %v687
        %753 = vmatprep.subr.bf16.mxu0 %v690
        %754 = vmatpush1.bf16.msra.mxu0 %v689
        %755 = vmatprep.subr.bf16.mxu0 %v692
        %756 = vmatpush1.bf16.msra.mxu0 %v691
        %757 = vmatprep.subr.bf16.mxu0 %v694
        %758 = vmatpush1.bf16.msra.mxu0 %v693
        %759 = vmatprep.subr.bf16.mxu0 %v696
        %760 = vmatpush1.bf16.msra.mxu0 %v695
        %761 = vmatprep.subr.bf16.mxu0 %v698
        %762 = vmatpush1.bf16.msra.mxu0 %v697
        %763 = vmatprep.mubr.bf16.mxu0 %v538
        %764 = vmatmul.mubr.bf16.gmra.mrb[0].mxu0 %v537
        %v765 = vpop.f32.mrb[0].mxu0
        %v766 = vadd.f32 0.0, %v765
        %v767 = vpop.f32.mrb[0].mxu0
        %v768 = vadd.f32 0.0, %v767
        %v769 = vpop.f32.mrb[0].mxu0
        %v770 = vpop.f32.mrb[0].mxu0
        %771 = vdwg.mxu0
        %v772 = vadd.f32 %v276, %v766
        %v773 = vadd.f32 %v280, %v768
        %774 = vst [vmem:[%s269] sm:$0xff] %v772
        %775 = vst [vmem:[%s269 + $0x8] sm:$0xff] %v773
        %s776 = sand.u32 %s141, 1
        %s777 = scalar_lea.sflag [#allocation4], %s776
        %s778 = sand.u32 %s141, 1
        %s779 = smul.addr %s778, 16
        %s780 = scalar_lea.vmem [#allocation8], %s779
        // Predicated region
        $region53: #{tpu_custom_call.1} parent=39 // pred_check
          %p781 = pneg %p151
        $region54: #{tpu_custom_call.1} parent=39 // pred_check_branch
          %783 = sbr.rel (%p781) target = $region56
        $region55: #{tpu_custom_call.1} parent=39 // pred_region
          %s785 = ssub.s32 256, 256
          %786 = vsyncadd %s777, %s785
          %s787 = smul.addr %s23, 2
          %s788 = smul.addr %s787, 128
          %s789 = scalar_lea.hbm %s5, %s788
          %s791 = sshll.u32 %s780, 4
          %s792 = int_to_ptr.vmem [resolvable:$true] %s791
          %794 = dma.vmem_to_hbm [thread:$0]  %s792, 256, %s789, %s777
        $region56: #{tpu_custom_call.1} parent=39 // pred_fallthru
          _
      $region40: #{tpu_custom_call.1} parent=5 // pred_fallthru
        _
      %p795 = scmp.le.s32.totalorder 2, %s18
      // Predicated region
      $region57: #{tpu_custom_call.1} parent=5 // pred_check
        %p796 = pneg %p795
      $region58: #{tpu_custom_call.1} parent=5 // pred_check_branch
        %798 = sbr.rel (%p796) target = $region60
      $region59: #{tpu_custom_call.1} parent=5 // pred_region
        %s799 = ssub.s32 %s18, 2
        // Predicated region
        $region61: #{tpu_custom_call.1} parent=59 // pred_check
          %p800 = pneg %p157
        $region62: #{tpu_custom_call.1} parent=59 // pred_check_branch
          %802 = sbr.rel (%p800) target = $region64
        $region63: #{tpu_custom_call.1} parent=59 // pred_region
          %s803 = sand.u32 %s142, 1
          %s804 = scalar_lea.sflag [#allocation4], %s803
          %s805 = sand.u32 %s142, 1
          %s806 = smul.addr %s805, 16
          %s807 = scalar_lea.vmem [#allocation8], %s806
          %808 = dma.done %s804, 256
        $region64: #{tpu_custom_call.1} parent=59 // pred_fallthru
          _
      $region60: #{tpu_custom_call.1} parent=5 // pred_fallthru
        _
    $region6: #{tpu_custom_call.1} parent=1 // loop_footer
      %s22 = sadd.s32 1, %s18
    $region7: #{tpu_custom_call.1} parent=1 // loop_footer_branch
      %17 = sbr.rel target = $region3
    $region8: #{tpu_custom_call.1} parent=1 // loop_exit
      _
    %809 = vsyncpa [#allocation3], 1
    %s810 = scalar_lea.sflag [#allocation3], 1
    %811 = vsyncpa %s810, 1
    %812 = vsyncpa [#allocation6], 1
    %813 = vsyncpa [#allocation4], 1
    %s814 = scalar_lea.sflag [#allocation4], 1
    %815 = vsyncpa %s814, 1

</llo_original>
